<compile_context>
chip_gen: v5e
topology: v5e:2x2
jax: 0.10.0
libtpu: 0.0.40
codegen_flags: <defaults>
</compile_context>

<pallas_src>
import functools

import jax
import jax.numpy as jnp
from jax import lax
from jax.experimental import pallas as pl
from jax.experimental.pallas import tpu as pltpu

_LANE = 128
_SUBLANE = 8
_MAX_ROW_TILE = 8192

_BUFFERED = getattr(pl, "Buffered", None)


def _round_up(a, b):
    return (a + b - 1) // b * b


def _cdiv(a, b):
    return -(-a // b)


def _device_budget():
    """(tile_bytes, input_buffers, vmem_limit_bytes) per TPU generation."""
    kind = ""
    try:
        kind = jax.devices()[0].device_kind.lower()
    except Exception:
        pass
    if "v7" in kind or "7x" in kind:
        # v7x: 64 MiB VMEM per TensorCore -> big tiles, pipeline depth 2, headroom.
        return 8 * 1024 * 1024, 2, 48 * 1024 * 1024
    if "v5" in kind or "v6" in kind:
        # v5e / v6e: 128 MiB physical VMEM -> raise scoped limit, depth-3 pipeline.
        return 8 * 1024 * 1024, 3, 64 * 1024 * 1024
    # Unknown device: conservative budget that also fits v7x.
    return 8 * 1024 * 1024, 2, 48 * 1024 * 1024


def _make_in_spec(block_shape, index_map, buffers, total_steps):
    """Input BlockSpec, requesting a deeper pipeline only when it can help."""
    if _BUFFERED is not None and buffers > 2 and total_steps > buffers:
        try:
            return pl.BlockSpec(block_shape, index_map, pipeline_mode=_BUFFERED(buffers))
        except TypeError:  # older jax without pipeline_mode
            pass
    return pl.BlockSpec(block_shape, index_map)


# ----------------------------------------------------------------------------- kernels

def _gap_kernel_single(x_ref, o_ref, *, inv_hw):
    # x_ref: (row_tile, hw); o_ref: (1, row_tile) lane-dense means.
    # Fused widen-into-reduce (no whole-tile f32 temp for bf16 inputs).
    s = jnp.sum(x_ref[...], axis=-1, dtype=jnp.float32)            # (row_tile,)
    o_ref[...] = (s * inv_hw)[None, :].astype(o_ref.dtype)


def _gap_kernel_split(x_ref, o_ref, acc_ref, *, inv_hw, hw, hw_tile, needs_mask):
    # x_ref: (row_tile, hw_tile); acc_ref: (row_tile, 1) f32; o_ref: (1, row_tile).
    k = pl.program_id(1)

    @pl.when(k == 0)
    def _init():
        acc_ref[...] = jnp.zeros_like(acc_ref)

    x = x_ref[...]
    if needs_mask:
        # Mask the ragged last H*W chunk in-kernel (no wrapper-side column padding).
        col = lax.broadcasted_iota(jnp.int32, (1, hw_tile), 1) + k * hw_tile
        x = jnp.where(col < hw, x, jnp.zeros((), x.dtype))

    # Accumulate in the natural (row_tile, 1) column layout -> no per-step relayout.
    acc_ref[...] += jnp.sum(x, axis=-1, keepdims=True, dtype=jnp.float32)

    @pl.when(k == pl.num_programs(1) - 1)
    def _finalize():
        s = acc_ref[...][:, 0]                                      # (row_tile,)
        o_ref[...] = (s * inv_hw)[None, :].astype(o_ref.dtype)      # one relayout per tile


# ----------------------------------------------------------------------------- wrapper

def global_avg_pool2d(x, *, tile_bytes=None, input_buffers=None, vmem_limit_bytes=None):
    """Equivalent to F.avg_pool2d(x, kernel_size=x.shape[2:]) for NCHW input.

    Returns an array of shape (N, C, 1, 1) with the same dtype as x.
    """
    N, C, H, W = x.shape
    rows = N * C
    hw = H * W
    itemsize = jnp.dtype(x.dtype).itemsize

    d_tile, d_buf, d_vmem = _device_budget()
    tile_bytes = d_tile if tile_bytes is None else tile_bytes
    input_buffers = d_buf if input_buffers is None else input_buffers
    vmem_limit_bytes = d_vmem if vmem_limit_bytes is None else vmem_limit_bytes

    x2 = x.reshape(rows, hw)          # metadata-only reshape; NO jnp.pad copy anywhere.
    inv_hw = 1.0 / float(hw)

    hw_lanes = _round_up(hw, _LANE)   # lane-padded width -> VMEM cost per row
    row_bytes = hw_lanes * itemsize
    rows_that_fit = tile_bytes // row_bytes

    if rows_that_fit >= _SUBLANE:
        # ---- common path: whole spatial extent per step, tile over rows only -------
        row_tile = min(_MAX_ROW_TILE, (rows_that_fit // _SUBLANE) * _SUBLANE)
        row_tile = min(row_tile, _round_up(rows, _SUBLANE))
        # Megacore balance: >= 2 row tiles whenever rows allow (v7x has 2 TCs).
        row_tile = min(row_tile, _round_up(_cdiv(rows, 2), _SUBLANE))
        if row_tile >= _LANE:
            row_tile = (row_tile // _LANE) * _LANE    # unmasked lane-dense output stores
        row_tile = max(row_tile, _SUBLANE)
        num_row_tiles = _cdiv(rows, row_tile)         # ragged last tile OK (output sliced)

        kernel = functools.partial(_gap_kernel_single, inv_hw=inv_hw)
        grid = (num_row_tiles,)
        in_specs = [_make_in_spec((row_tile, hw), lambda i: (i, 0),
                                  input_buffers, num_row_tiles)]
        out_specs = pl.BlockSpec((1, row_tile), lambda i: (i, 0))
        scratch_shapes = []
        dim_sem = ("parallel",)
    else:
        # ---- huge H*W: also chunk the reduction axis (innermost, "arbitrary") ------
        row_tile = min(_LANE, _round_up(rows, _SUBLANE),
                       _round_up(_cdiv(rows, 2), _SUBLANE))
        row_tile = max(row_tile, _SUBLANE)
        num_row_tiles = _cdiv(rows, row_tile)

        hw_tile_cap = max(_LANE, (tile_bytes // (row_tile * itemsize)) // _LANE * _LANE)
        num_hw_tiles = _cdiv(hw, hw_tile_cap)
        # Balanced chunks (keeps the ragged tail small); ragged tail is masked in-kernel.
        hw_tile = min(hw_tile_cap, _round_up(_cdiv(hw, num_hw_tiles), _LANE))
        num_hw_tiles = _cdiv(hw, hw_tile)
        needs_mask = (hw % hw_tile) != 0

        kernel = functools.partial(_gap_kernel_split, inv_hw=inv_hw, hw=hw,
                                   hw_tile=hw_tile, needs_mask=needs_mask)
        grid = (num_row_tiles, num_hw_tiles)
        in_specs = [_make_in_spec((row_tile, hw_tile), lambda i, k: (i, k),
                                  input_buffers, num_row_tiles * num_hw_tiles)]
        out_specs = pl.BlockSpec((1, row_tile), lambda i, k: (i, 0))
        scratch_shapes = [pltpu.VMEM((row_tile, 1), jnp.float32)]
        dim_sem = ("parallel", "arbitrary")

    out = pl.pallas_call(
        kernel,
        out_shape=jax.ShapeDtypeStruct((num_row_tiles, row_tile), x.dtype),
        grid_spec=pltpu.PrefetchScalarGridSpec(
            num_scalar_prefetch=0,
            grid=grid,
            in_specs=in_specs,
            out_specs=out_specs,
            scratch_shapes=scratch_shapes,
        ),
        compiler_params=pltpu.CompilerParams(
            dimension_semantics=dim_sem,
            vmem_limit_bytes=vmem_limit_bytes,
        ),
        cost_estimate=pl.CostEstimate(
            flops=rows * hw,
            transcendentals=0,
            bytes_accessed=rows * hw * itemsize + rows * itemsize,
        ),
    )(x2)

    # Drop the garbage means of any ragged-boundary rows, restore (N, C, 1, 1).
    return out.reshape(num_row_tiles * row_tile)[:rows].reshape(N, C, 1, 1)


if __name__ == "__main__":
    key = jax.random.PRNGKey(0)
    k0, k1, k2, k3 = jax.random.split(key, 4)

    # 1) Primary shape (matches the PyTorch module's NCHW input).
    x = jax.random.normal(k0, (2, 4, 16, 16), dtype=jnp.float32)
    out = jax.block_until_ready(global_avg_pool2d(x))
    ref = jnp.mean(x, axis=(2, 3), keepdims=True)
    assert out.shape == (2, 4, 1, 1), out.shape
    assert jnp.allclose(out, ref, atol=1e-5, rtol=1e-5), "mismatch vs reference"

    # 2) Ragged rows (N*C=6, not a multiple of 8) + non-128 spatial extent (hw=49).
    x_odd = jax.random.normal(k1, (2, 3, 7, 7), dtype=jnp.float32)
    out_odd = jax.block_until_ready(global_avg_pool2d(x_odd))
    ref_odd = jnp.mean(x_odd, axis=(2, 3), keepdims=True)
    assert out_odd.shape == (2, 3, 1, 1), out_odd.shape
    assert jnp.allclose(out_odd, ref_odd, atol=1e-5, rtol=1e-5), "mismatch (ragged rows)"

    # 3) Force the split-H*W path (accumulator + in-kernel ragged-chunk mask) on a
    #    small input by shrinking the per-step byte budget.
    x_split = jax.random.normal(k2, (1, 2, 40, 40), dtype=jnp.float32)
    out_split = jax.block_until_ready(
        global_avg_pool2d(x_split, tile_bytes=4096, input_buffers=2))
    ref_split = jnp.mean(x_split, axis=(2, 3), keepdims=True)
    assert out_split.shape == (1, 2, 1, 1), out_split.shape
    assert jnp.allclose(out_split, ref_split, atol=1e-5, rtol=1e-5), "mismatch (split hw)"

    # 4) bf16 input (kernel accumulates in f32).
    x_bf = jax.random.normal(k3, (2, 4, 16, 16), dtype=jnp.bfloat16)
    out_bf = jax.block_until_ready(global_avg_pool2d(x_bf))
    ref_bf = jnp.mean(x_bf.astype(jnp.float32), axis=(2, 3), keepdims=True)
    assert out_bf.shape == (2, 4, 1, 1), out_bf.shape
    assert jnp.allclose(out_bf.astype(jnp.float32), ref_bf, atol=2e-2, rtol=2e-2), "mismatch (bf16)"

    print("KERNEL_OK")
</pallas_src>

<mosaic_0001>
module attributes {stable_mosaic.version = 11 : i64} {
  func.func @_gap_kernel_single(%arg0: i32, %arg1: memref<8x256xf32, #tpu.memory_space<vmem>>, %arg2: memref<1x8xf32, #tpu.memory_space<vmem>>) attributes {dimension_semantics = [#tpu.dimension_semantics<parallel>], iteration_bounds = array<i64: 1>, scalar_prefetch = 0 : i64, scratch_operands = 0 : i64, tpu.core_type = #tpu.core_type<tc>, window_params = [{transform_indices = @transform_0, window_bounds = array<i64: 8, 256>}, {transform_indices = @transform_1, window_bounds = array<i64: 1, 8>}]} {
    %c0 = arith.constant 0 : index
    %c0_0 = arith.constant 0 : index
    %0 = vector.load %arg1[%c0, %c0_0] : memref<8x256xf32, #tpu.memory_space<vmem>>, vector<8x256xf32>
    %cst = arith.constant dense<0.000000e+00> : vector<8xf32>
    %1 = vector.multi_reduction <add>, %0, %cst [1] : vector<8x256xf32> to vector<8xf32>
    %cst_1 = arith.constant 3.906250e-03 : f32
    %2 = vector.broadcast %cst_1 : f32 to vector<8xf32>
    %3 = arith.mulf %1, %2 : vector<8xf32>
    %4 = vector.shape_cast %3 : vector<8xf32> to vector<1x8xf32>
    %c0_2 = arith.constant 0 : index
    %c0_3 = arith.constant 0 : index
    %5 = vector.load %arg2[%c0_2, %c0_3] : memref<1x8xf32, #tpu.memory_space<vmem>>, vector<1x8xf32>
    tpu.vector_store %arg2[%c0_2, %c0_3], %4 {strides = array<i32>} : memref<1x8xf32, #tpu.memory_space<vmem>>, vector<1x8xf32>,
    return
  }
  func.func @transform_0(%arg0: i32) -> (i32, i32) {
    %c0_i32 = arith.constant 0 : i32
    %c0_i32_0 = arith.constant 0 : i32
    return %arg0, %c0_i32 : i32, i32
  }
  func.func @transform_1(%arg0: i32) -> (i32, i32) {
    %c0_i32 = arith.constant 0 : i32
    %c0_i32_0 = arith.constant 0 : i32
    return %arg0, %c0_i32 : i32, i32
  }
}

</mosaic_0001>

<llo_original>
// kernel: tpu_custom_call.1
$region0: #{tpu_custom_call.1}
  #allocation0 [shape = 'u32[]', space=smem, size = 0x4, offset = 0x4, fixed_abs, tag = 'smem constant byte address 0x4 - core index']
  #allocation1 [shape = 'u32[72,128]{1,0:T(1,128)}', space=vmem, size = 0x9000, scoped, tag = 'internal scratch']
  %s0 = inlined_call_operand.hbm [shape: f32[8,256], index: 0, kind: input, shape index: {}]
  %s1 = inlined_call_operand.hbm [shape: f32[1,8], index: 1, kind: output, shape index: {}]
  %s2 = sld [smem:[#allocation0]]
  $region18: #{tpu_custom_call.1} parent=0
    _
  %s4 = ssub.s32 1, %s2
  %s5 = scalar_select 0, %s4, %s2
  $region1: #{tpu_custom_call.1} parent=0
    #allocation2 [shape = 'u8[8192]{0}', space=vmem, size = 0x2000, scoped, tag = 'input window, operand 0, single buffered']
    #allocation3 [shape = 's32[1]{0}', space=sflag, size = 0x4, scoped, tag = 'scoped memory for tpu_custom_call.1']
    #allocation4 [shape = 's32[1]{0}', space=sflag, size = 0x4, scoped, tag = 'scoped memory for tpu_custom_call.1']
    #allocation5 [shape = 'u8[512]{0}', space=vmem, size = 0x400, scoped, tag = 'output window, operand 0, single buffered']
    %6 = vsyncpa [#allocation3], 0
    %7 = vsyncpa [#allocation4], 0
    // Predicated region
    $region2: #{tpu_custom_call.1} parent=1 // pred_check
      _
    $region3: #{tpu_custom_call.1} parent=1 // pred_check_branch
      %9 = sbr.rel (0) target = $region5
    $region4: #{tpu_custom_call.1} parent=1 // pred_region
      %11 = vsyncadd [#allocation3], 0
      %s13 = sshll.u32 %s0, 4
      %s14 = int_to_ptr.hbm [resolvable:$true] %s13
      %s15 = sshll.u32 [#allocation2], 4
      %s16 = int_to_ptr.vmem [resolvable:$true] %s15
      %18 = dma.hbm_to_vmem [thread:$0]  %s14, 256, %s16, [#allocation3]
    $region5: #{tpu_custom_call.1} parent=1 // pred_fallthru
      _
    // Predicated region
    $region6: #{tpu_custom_call.1} parent=1 // pred_check
      _
    $region7: #{tpu_custom_call.1} parent=1 // pred_check_branch
      %20 = sbr.rel (0) target = $region9
    $region8: #{tpu_custom_call.1} parent=1 // pred_region
      %22 = dma.done [#allocation3], 256
    $region9: #{tpu_custom_call.1} parent=1 // pred_fallthru
      _
    %v23 = vld [vmem:[#allocation2] sm:$0xff]
    %v24 = vld [vmem:[#allocation2 + $0x8] sm:$0xff]
    %v25 = vadd.f32 %v23, %v24
    %26 = vadd.xlane.f32.xlu0 %v25
    %v27 = vpop.xlane.xlu0 %26
    %v28 = vmul.f32 %v27, 0.00390625
    %v30 = vlaneseq
    %v31 = vand.u32 %v30, 127
    %v32 = vperm.slane %v28, %v31
    %vm34 = vcmask 57344
    %35 = vst.msk [vmem:[#allocation5] sm:$0x1] %vm34, %v32
    // Predicated region
    $region10: #{tpu_custom_call.1} parent=1 // pred_check
      _
    $region11: #{tpu_custom_call.1} parent=1 // pred_check_branch
      %37 = sbr.rel (0) target = $region13
    $region12: #{tpu_custom_call.1} parent=1 // pred_region
      %39 = vsyncadd [#allocation4], 0
      %s41 = sshll.u32 [#allocation5], 4
      %s42 = int_to_ptr.vmem [resolvable:$true] %s41
      %s43 = sshll.u32 %s1, 4
      %s44 = int_to_ptr.hbm [resolvable:$true] %s43
      %46 = dma.vmem_to_hbm [thread:$0]  %s42, 16, %s44, [#allocation4]
    $region13: #{tpu_custom_call.1} parent=1 // pred_fallthru
      _
    // Predicated region
    $region14: #{tpu_custom_call.1} parent=1 // pred_check
      _
    $region15: #{tpu_custom_call.1} parent=1 // pred_check_branch
      %48 = sbr.rel (0) target = $region17
    $region16: #{tpu_custom_call.1} parent=1 // pred_region
      %50 = dma.done [#allocation4], 16
    $region17: #{tpu_custom_call.1} parent=1 // pred_fallthru
      _
    %51 = vsyncpa [#allocation3], 1
    %52 = vsyncpa [#allocation4], 1

</llo_original>
